<compile_context>
chip_gen: v6e
topology: v6e:2x2x1
jax: 0.10.0
libtpu: 0.0.40
codegen_flags: <defaults>
</compile_context>

<pallas_src>
import functools

import jax
import jax.numpy as jnp
from jax.experimental import pallas as pl
from jax.experimental.pallas import tpu as pltpu


def _gat_kernel(sv_ref, ne_ref, w_ref, o_ref, *, tb, n):
    # sv_ref: (tb, H) bf16   ne_ref: (tb*N, H) bf16   w_ref: (H, H) bf16
    # o_ref : (tb, H) original dtype
    w = w_ref[...]

    # Node projection as ONE large-M MXU matmul: (tb*N, H) @ (H, H), f32 acc.
    ne_p = jnp.dot(ne_ref[...], w, preferred_element_type=jnp.float32)   # (tb*N, H)

    # Sentence projection (small M; negligible next to the node matmul).
    s = jnp.dot(sv_ref[...], w, preferred_element_type=jnp.float32)      # (tb, H)

    h = ne_p.shape[-1]
    # Split the fused batch axis back out; layout-free when N % 8 == 0.
    ne_p3 = ne_p.reshape(tb, n, h)                                       # (tb, N, H)

    # Attention scores 'bh,bnh->bn' on the VPU/XLU (a batched M=1 matmul would
    # leave the MXU systolic array nearly empty). All elementwise math is f32
    # (v5e has no bf16 VPU).
    scores = jnp.sum(s[:, None, :] * ne_p3, axis=-1)                     # (tb, N)

    # Max-stabilized softmax over nodes, exact normalization.
    m = jnp.max(scores, axis=-1, keepdims=True)
    e = jnp.exp(scores - m)
    attn = e / jnp.sum(e, axis=-1, keepdims=True)                        # (tb, N)

    # Weighted sum of projected nodes 'bn,bnh->bh' on the VPU/XLU.
    out = jnp.sum(attn[:, :, None] * ne_p3, axis=1)                      # (tb, H)

    o_ref[...] = out.astype(o_ref.dtype)


def _pick_tb(B, N, H, itemsize, budget_bytes):
    """Largest batch tile whose per-step VMEM working set fits `budget_bytes`.

    Prefers tiles that (a) divide B so the (B, N, H) stream is never padded,
    (b) keep block sublane dims aligned (tb % 8 == 0, or tb == B so blocks
    cover the full array), and (c) leave >= 2 grid steps when that stays
    aligned, so v7x's two TensorCores both get work.
    """
    # Per batch row (bytes): double-buffered bf16 ne + sv inputs, the f32
    # projected-node intermediate (+ one elementwise temp), double-buffered out.
    per_row = (2 * N * H + 2 * H) * itemsize + 2 * N * H * 4 + 2 * H * 4
    fixed = 2 * H * H * itemsize                    # double-buffered W
    cap = max(1, (budget_bytes - fixed) // per_row)

    aligned = [t for t in range(1, min(B, cap) + 1)
               if B % t == 0 and (t % 8 == 0 or t == B)]
    if aligned:
        tb = aligned[-1]
    else:  # fall back to the largest divisor of B that fits
        tb = max(t for t in range(1, min(B, cap) + 1) if B % t == 0)

    # If the whole batch fits in one step, split it when that keeps alignment,
    # so a parallel grid axis exists for v7x's two TensorCores.
    if tb == B and B > 1:
        halves = [t for t in range(B // 2, 7, -1) if B % t == 0 and t % 8 == 0]
        if halves:
            tb = halves[0]
    return tb


def simple_gat_layer(sentence_vec, node_embedding, proj_w, *,
                     tb=None,
                     compute_dtype=jnp.bfloat16,
                     vmem_budget_bytes=20 * 1024 * 1024,
                     single_buffer_w=False):
    """Pallas forward of SimpleGatLayer.

    sentence_vec:   (B, H)
    node_embedding: (B, N, H)
    proj_w:         (H, H)
    returns:        (B, H) in sentence_vec.dtype
    """
    B, H = sentence_vec.shape
    _, N, _ = node_embedding.shape
    out_dtype = sentence_vec.dtype
    itemsize = jnp.dtype(compute_dtype).itemsize

    if tb is None:
        tb = _pick_tb(B, N, H, itemsize, vmem_budget_bytes)
    tb = max(1, min(int(tb), B))
    while B % tb:          # always a divisor of B: never pad the (B,N,H) stream
        tb -= 1

    # bf16 operands halve HBM bytes of the dominant (B, N, H) stream and hit the
    # MXU's native dtype; accumulation stays f32 inside the kernel. (Callers can
    # pass bf16 inputs to avoid the cast pass entirely.)
    sv = sentence_vec.astype(compute_dtype)
    ne2d = node_embedding.astype(compute_dtype).reshape(B * N, H)  # contiguous: free
    w = proj_w.astype(compute_dtype)

    # W's index_map is grid-invariant, so a single buffer suffices; kept behind a
    # flag since not every jax version accepts Buffered(1) at the pallas_call level.
    w_spec_kwargs = dict(pipeline_mode=pl.Buffered(1)) if single_buffer_w else {}

    kernel = functools.partial(_gat_kernel, tb=tb, n=N)

    out = pl.pallas_call(
        kernel,
        out_shape=jax.ShapeDtypeStruct((B, H), out_dtype),
        grid_spec=pltpu.PrefetchScalarGridSpec(
            num_scalar_prefetch=0,
            grid=(B // tb,),
            in_specs=[
                pl.BlockSpec((tb, H), lambda b: (b, 0)),
                pl.BlockSpec((tb * N, H), lambda b: (b, 0)),
                pl.BlockSpec((H, H), lambda b: (0, 0), **w_spec_kwargs),
            ],
            out_specs=pl.BlockSpec((tb, H), lambda b: (b, 0)),
        ),
        compiler_params=pltpu.CompilerParams(
            dimension_semantics=("parallel",),
            # Raise the scoped-VMEM ceiling (v5e default 16 MiB) while staying
            # well under v7x's 64 MiB physical VMEM.
            vmem_limit_bytes=32 * 1024 * 1024,
        ),
    )(sv, ne2d, w)

    return out


def _reference(sentence_vec, node_embedding, proj_w, compute_dtype=jnp.bfloat16):
    # Matching-precision reference: bf16 operands, f32 accumulation/softmax.
    sv = sentence_vec.astype(compute_dtype)
    ne = node_embedding.astype(compute_dtype)
    w = proj_w.astype(compute_dtype)
    s = jnp.dot(sv, w, preferred_element_type=jnp.float32)                   # (B, H)
    ne_p = jnp.einsum("bnh,hk->bnk", ne, w,
                      preferred_element_type=jnp.float32)                    # (B, N, H)
    scores = jnp.einsum("bh,bnh->bn", s, ne_p,
                        preferred_element_type=jnp.float32)                  # (B, N)
    attn = jax.nn.softmax(scores, axis=-1)
    out = jnp.einsum("bn,bnh->bh", attn, ne_p,
                     preferred_element_type=jnp.float32)                     # (B, H)
    return out.astype(sentence_vec.dtype)


if __name__ == "__main__":
    B, N, H = 2, 8, 32  # batch, num nodes, hidden dim

    key = jax.random.PRNGKey(0)
    k_sv, k_ne, k_w = jax.random.split(key, 3)

    sentence_vec = jax.random.normal(k_sv, (B, H), dtype=jnp.float32)
    node_embedding = jax.random.normal(k_ne, (B, N, H), dtype=jnp.float32)

    # Deterministic xavier_uniform_ init with gain=1.414 (as in the module).
    gain = 1.414
    bound = gain * jnp.sqrt(6.0 / (H + H))
    proj_w = jax.random.uniform(k_w, (H, H), dtype=jnp.float32,
                                minval=-bound, maxval=bound)

    out = simple_gat_layer(sentence_vec, node_embedding, proj_w)
    out = jax.block_until_ready(out)

    ref = _reference(sentence_vec, node_embedding, proj_w)
    assert out.shape == (B, H)
    max_err = jnp.max(jnp.abs(out - ref))
    assert jnp.allclose(out, ref, atol=2e-3, rtol=2e-3), (
        f"max abs err = {max_err}")

    print("KERNEL_OK")
</pallas_src>

<mosaic_0001>
module attributes {stable_mosaic.version = 11 : i64} {
  func.func @_gat_kernel(%arg0: i32, %arg1: memref<2x32xbf16, #tpu.memory_space<vmem>>, %arg2: memref<16x32xbf16, #tpu.memory_space<vmem>>, %arg3: memref<32x32xbf16, #tpu.memory_space<vmem>>, %arg4: memref<2x32xf32, #tpu.memory_space<vmem>>) attributes {dimension_semantics = [#tpu.dimension_semantics<parallel>], iteration_bounds = array<i64: 1>, scalar_prefetch = 0 : i64, scratch_operands = 0 : i64, tpu.core_type = #tpu.core_type<tc>, window_params = [{transform_indices = @transform_0, window_bounds = array<i64: 2, 32>}, {transform_indices = @transform_1, window_bounds = array<i64: 16, 32>}, {pipeline_mode = #tpu.pipeline_mode<synchronous>, transform_indices = @transform_2, window_bounds = array<i64: 32, 32>}, {transform_indices = @transform_3, window_bounds = array<i64: 2, 32>}]} {
    %c0 = arith.constant 0 : index
    %c0_0 = arith.constant 0 : index
    %0 = vector.load %arg3[%c0, %c0_0] : memref<32x32xbf16, #tpu.memory_space<vmem>>, vector<32x32xbf16>
    %c0_1 = arith.constant 0 : index
    %c0_2 = arith.constant 0 : index
    %1 = vector.load %arg2[%c0_1, %c0_2] : memref<16x32xbf16, #tpu.memory_space<vmem>>, vector<16x32xbf16>
    %cst = arith.constant dense<0.000000e+00> : vector<16x32xf32>
    %2 = tpu.matmul %1, %0, %cst {dimension_numbers = #tpu.dot_dimension_numbers<[1], [0], [0], [1], [0, 0, 1, 1], [], []>} : vector<16x32xbf16>, vector<32x32xbf16>, vector<16x32xf32> -> vector<16x32xf32>
    %c0_3 = arith.constant 0 : index
    %c0_4 = arith.constant 0 : index
    %3 = vector.load %arg1[%c0_3, %c0_4] : memref<2x32xbf16, #tpu.memory_space<vmem>>, vector<2x32xbf16>
    %cst_5 = arith.constant dense<0.000000e+00> : vector<2x32xf32>
    %4 = tpu.matmul %3, %0, %cst_5 {dimension_numbers = #tpu.dot_dimension_numbers<[1], [0], [0], [1], [0, 0, 1, 1], [], []>} : vector<2x32xbf16>, vector<32x32xbf16>, vector<2x32xf32> -> vector<2x32xf32>
    %5 = vector.shape_cast %2 : vector<16x32xf32> to vector<2x8x32xf32>
    %6 = vector.shape_cast %4 : vector<2x32xf32> to vector<2x1x32xf32>
    %7 = vector.broadcast %6 : vector<2x1x32xf32> to vector<2x8x32xf32>
    %8 = arith.mulf %7, %5 : vector<2x8x32xf32>
    %cst_6 = arith.constant dense<0.000000e+00> : vector<2x8xf32>
    %9 = vector.multi_reduction <add>, %8, %cst_6 [2] : vector<2x8x32xf32> to vector<2x8xf32>
    %cst_7 = arith.constant dense<0xFF800000> : vector<2xf32>
    %10 = vector.multi_reduction <maximumf>, %9, %cst_7 [1] : vector<2x8xf32> to vector<2xf32>
    %11 = vector.shape_cast %10 : vector<2xf32> to vector<2x1xf32>
    %12 = vector.broadcast %11 : vector<2x1xf32> to vector<2x8xf32>
    %13 = arith.subf %9, %12 : vector<2x8xf32>
    %14 = math.exp %13 : vector<2x8xf32>
    %cst_8 = arith.constant dense<0.000000e+00> : vector<2xf32>
    %15 = vector.multi_reduction <add>, %14, %cst_8 [1] : vector<2x8xf32> to vector<2xf32>
    %16 = vector.shape_cast %15 : vector<2xf32> to vector<2x1xf32>
    %17 = vector.broadcast %16 : vector<2x1xf32> to vector<2x8xf32>
    %18 = arith.divf %14, %17 : vector<2x8xf32>
    %19 = vector.shape_cast %18 : vector<2x8xf32> to vector<2x8x1xf32>
    %20 = vector.broadcast %19 : vector<2x8x1xf32> to vector<2x8x32xf32>
    %21 = arith.mulf %20, %5 : vector<2x8x32xf32>
    %cst_9 = arith.constant dense<0.000000e+00> : vector<2x32xf32>
    %22 = vector.multi_reduction <add>, %21, %cst_9 [1] : vector<2x8x32xf32> to vector<2x32xf32>
    %c0_10 = arith.constant 0 : index
    %c0_11 = arith.constant 0 : index
    %23 = vector.load %arg4[%c0_10, %c0_11] : memref<2x32xf32, #tpu.memory_space<vmem>>, vector<2x32xf32>
    tpu.vector_store %arg4[%c0_10, %c0_11], %22 {strides = array<i32>} : memref<2x32xf32, #tpu.memory_space<vmem>>, vector<2x32xf32>,
    return
  }
  func.func @transform_0(%arg0: i32) -> (i32, i32) {
    %c0_i32 = arith.constant 0 : i32
    %c0_i32_0 = arith.constant 0 : i32
    return %arg0, %c0_i32 : i32, i32
  }
  func.func @transform_1(%arg0: i32) -> (i32, i32) {
    %c0_i32 = arith.constant 0 : i32
    %c0_i32_0 = arith.constant 0 : i32
    return %arg0, %c0_i32 : i32, i32
  }
  func.func @transform_2(%arg0: i32) -> (i32, i32) {
    %c0_i32 = arith.constant 0 : i32
    %c0_i32_0 = arith.constant 0 : i32
    %c0_i32_1 = arith.constant 0 : i32
    return %c0_i32, %c0_i32_0 : i32, i32
  }
  func.func @transform_3(%arg0: i32) -> (i32, i32) {
    %c0_i32 = arith.constant 0 : i32
    %c0_i32_0 = arith.constant 0 : i32
    return %arg0, %c0_i32 : i32, i32
  }
}

</mosaic_0001>

<llo_original>
// kernel: tpu_custom_call.1
$region0: #{tpu_custom_call.1}
  #allocation0 [shape = 'u32[]', space=smem, size = 0x4, offset = 0x4, fixed_abs, tag = 'smem constant byte address 0x4 - core index']
  #allocation1 [shape = 'u32[144,128]{1,0:T(1,128)}', space=vmem, size = 0x12000, scoped, tag = 'internal scratch']
  %s0 = inlined_call_operand.hbm [shape: bf16[2,32], index: 0, kind: input, shape index: {}]
  %s1 = inlined_call_operand.hbm [shape: bf16[16,32], index: 1, kind: input, shape index: {}]
  %s2 = inlined_call_operand.hbm [shape: bf16[32,32], index: 2, kind: input, shape index: {}]
  %s3 = inlined_call_operand.hbm [shape: f32[2,32], index: 3, kind: output, shape index: {}]
  %s4 = sld [smem:[#allocation0]]
  $region34: #{tpu_custom_call.1} parent=0
    _
  %s6 = ssub.s32 1, %s4
  %s7 = scalar_select 0, %s6, %s4
  $region1: #{tpu_custom_call.1} parent=0
    #allocation2 [shape = 'u8[512]{0}', space=vmem, size = 0x400, scoped, tag = 'input window, operand 0, single buffered']
    #allocation3 [shape = 's32[1]{0}', space=sflag, size = 0x4, scoped, tag = 'scoped memory for tpu_custom_call.1']
    #allocation4 [shape = 's32[1]{0}', space=sflag, size = 0x4, scoped, tag = 'scoped memory for tpu_custom_call.1']
    #allocation5 [shape = 'u8[4096]{0}', space=vmem, size = 0x1000, scoped, tag = 'input window, operand 1, single buffered']
    #allocation6 [shape = 's32[1]{0}', space=sflag, size = 0x4, scoped, tag = 'scoped memory for tpu_custom_call.1']
    #allocation7 [shape = 'u8[8192]{0}', space=vmem, size = 0x2000, scoped, tag = 'input window, operand 2, single buffered']
    #allocation8 [shape = 'u8[1024]{0}', space=vmem, size = 0x400, scoped, tag = 'output window, operand 0, single buffered']
    %8 = vsyncpa [#allocation3], 0
    %9 = vsyncpa [#allocation6], 0
    %10 = vsyncpa [#allocation4], 0
    // Predicated region
    $region2: #{tpu_custom_call.1} parent=1 // pred_check
      _
    $region3: #{tpu_custom_call.1} parent=1 // pred_check_branch
      %12 = sbr.rel (0) target = $region5
    $region4: #{tpu_custom_call.1} parent=1 // pred_region
      %s14 = ssub.s32 16, 16
      %15 = vsyncadd [#allocation3], %s14
      %s17 = sshll.u32 [#allocation2], 4
      %s18 = int_to_ptr.vmem [resolvable:$true] %s17
      %20 = dma.hbm_to_vmem [thread:$0]  %s0, 16, %s18, [#allocation3]
    $region5: #{tpu_custom_call.1} parent=1 // pred_fallthru
      _
    // Predicated region
    $region6: #{tpu_custom_call.1} parent=1 // pred_check
      _
    $region7: #{tpu_custom_call.1} parent=1 // pred_check_branch
      %22 = sbr.rel (0) target = $region9
    $region8: #{tpu_custom_call.1} parent=1 // pred_region
      %s24 = ssub.s32 128, 128
      %25 = vsyncadd [#allocation6], %s24
      %s26 = sshll.u32 [#allocation5], 4
      %s27 = int_to_ptr.vmem [resolvable:$true] %s26
      %32 = dma.hbm_to_vmem [thread:$0]  %s1, 128, %s27, [#allocation6], 64, 64, 4
    $region9: #{tpu_custom_call.1} parent=1 // pred_fallthru
      _
    // Predicated region
    $region10: #{tpu_custom_call.1} parent=1 // pred_check
      _
    $region11: #{tpu_custom_call.1} parent=1 // pred_check_branch
      %34 = sbr.rel (0) target = $region13
    $region12: #{tpu_custom_call.1} parent=1 // pred_region
      %s36 = ssub.s32 256, 256
      %37 = vsyncadd [#allocation6], %s36
      %s38 = sshll.u32 [#allocation7], 4
      %s39 = int_to_ptr.vmem [resolvable:$true] %s38
      %44 = dma.hbm_to_vmem [thread:$0]  %s2, 256, %s39, [#allocation6], 64, 64, 4
    $region13: #{tpu_custom_call.1} parent=1 // pred_fallthru
      _
    // Predicated region
    $region14: #{tpu_custom_call.1} parent=1 // pred_check
      _
    $region15: #{tpu_custom_call.1} parent=1 // pred_check_branch
      %46 = sbr.rel (0) target = $region17
    $region16: #{tpu_custom_call.1} parent=1 // pred_region
      %47 = dma.done [#allocation3], 16
    $region17: #{tpu_custom_call.1} parent=1 // pred_fallthru
      _
    // Predicated region
    $region18: #{tpu_custom_call.1} parent=1 // pred_check
      _
    $region19: #{tpu_custom_call.1} parent=1 // pred_check_branch
      %49 = sbr.rel (0) target = $region21
    $region20: #{tpu_custom_call.1} parent=1 // pred_region
      %50 = dma.done [#allocation6], 128
    $region21: #{tpu_custom_call.1} parent=1 // pred_fallthru
      _
    // Predicated region
    $region22: #{tpu_custom_call.1} parent=1 // pred_check
      _
    $region23: #{tpu_custom_call.1} parent=1 // pred_check_branch
      %52 = sbr.rel (0) target = $region25
    $region24: #{tpu_custom_call.1} parent=1 // pred_region
      %53 = dma.done [#allocation6], 256
    $region25: #{tpu_custom_call.1} parent=1 // pred_fallthru
      _
    %v55 = vld [vmem:[#allocation7] sm:$0xf]
    %v56 = vld [vmem:[#allocation7 + $0x4] sm:$0xf]
    %v57 = vld [vmem:[#allocation7 + $0x8] sm:$0xf]
    %v58 = vld [vmem:[#allocation7 + $0xc] sm:$0xf]
    %v59 = vld [vmem:[#allocation5] sm:$0xf]
    %v60 = vld [vmem:[#allocation5 + $0x4] sm:$0xf]
    %v63 = vunpack.c.l.b16 %v59
    %v64 = vunpack.c.l.b16 %v60
    %v65 = vpack.c.b16 %v64, %v63
    %v70 = vunpack.c.l.b16 %v55
    %v71 = vunpack.c.l.b16 %v56
    %v72 = vunpack.c.l.b16 %v57
    %v73 = vunpack.c.l.b16 %v58
    %v74 = vpack.c.b16 %v71, %v70
    %v75 = vpack.c.b16 %v73, %v72
    %vm78 = vcmask 261120
    %v80 = vsel %vm78, %v65, 0
    %82 = vmatprep.subr.bf16.mxu0 0
    %83 = vmatpush1.bf16.msra.mxu0 0
    %84 = vmatprep.subr.bf16.mxu0 0
    %85 = vmatpush1.bf16.msra.mxu0 0
    %86 = vmatprep.subr.bf16.mxu0 0
    %87 = vmatpush1.bf16.msra.mxu0 0
    %88 = vmatprep.subr.bf16.mxu0 0
    %89 = vmatpush1.bf16.msra.mxu0 0
    %90 = vmatprep.subr.bf16.mxu0 0
    %91 = vmatpush1.bf16.msra.mxu0 0
    %92 = vmatprep.subr.bf16.mxu0 0
    %93 = vmatpush1.bf16.msra.mxu0 0
    %94 = vmatprep.subr.bf16.mxu0 0
    %95 = vmatpush1.bf16.msra.mxu0 %v75
    %96 = vmatprep.subr.bf16.mxu0 0
    %97 = vmatpush1.bf16.msra.mxu0 %v74
    %98 = vmatprep.subr.bf16.mxu0 0
    %99 = vmatpush2.bf16.msra.mxu0 0
    %100 = vmatprep.subr.bf16.mxu0 0
    %101 = vmatpush2.bf16.msra.mxu0 0
    %102 = vmatprep.subr.bf16.mxu0 0
    %103 = vmatpush2.bf16.msra.mxu0 0
    %104 = vmatprep.subr.bf16.mxu0 0
    %105 = vmatpush2.bf16.msra.mxu0 0
    %106 = vmatprep.subr.bf16.mxu0 0
    %107 = vmatpush2.bf16.msra.mxu0 0
    %108 = vmatprep.subr.bf16.mxu0 0
    %109 = vmatpush2.bf16.msra.mxu0 0
    %110 = vmatprep.subr.bf16.mxu0 0
    %111 = vmatpush2.bf16.msra.mxu0 0
    %112 = vmatprep.subr.bf16.mxu0 0
    %113 = vmatpush2.bf16.msra.mxu0 0
    %114 = vmatprep.mubr.bf16.mxu0 0
    %115 = vmatmul.mubr.bf16.gmra.mxu0 %v80
    %v116 = vpop.f32.mrf.mxu0
    %v117 = vadd.f32 0.0, %v116
    %v118 = vpop.f32.mrf.mxu0
    %v119 = vpop.f32.mrf.mxu0
    %v120 = vadd.f32 0.0, %v119
    %v121 = vpop.f32.mrf.mxu0
    %122 = vdwg.mxu0
    %v123 = vld [vmem:[#allocation2] sm:$0x1]
    %v125 = vsel %vm78, %v123, 0
    %127 = vmatprep.subr.bf16.mxu0 0
    %128 = vmatpush1.bf16.msra.mxu0 0
    %129 = vmatprep.subr.bf16.mxu0 0
    %130 = vmatpush1.bf16.msra.mxu0 0
    %131 = vmatprep.subr.bf16.mxu0 0
    %132 = vmatpush1.bf16.msra.mxu0 0
    %133 = vmatprep.subr.bf16.mxu0 0
    %134 = vmatpush1.bf16.msra.mxu0 0
    %135 = vmatprep.subr.bf16.mxu0 0
    %136 = vmatpush1.bf16.msra.mxu0 0
    %137 = vmatprep.subr.bf16.mxu0 0
    %138 = vmatpush1.bf16.msra.mxu0 0
    %139 = vmatprep.subr.bf16.mxu0 0
    %140 = vmatpush1.bf16.msra.mxu0 %v75
    %141 = vmatprep.subr.bf16.mxu0 0
    %142 = vmatpush1.bf16.msra.mxu0 %v74
    %143 = vmatprep.subr.bf16.mxu0 0
    %144 = vmatpush2.bf16.msra.mxu0 0
    %145 = vmatprep.subr.bf16.mxu0 0
    %146 = vmatpush2.bf16.msra.mxu0 0
    %147 = vmatprep.subr.bf16.mxu0 0
    %148 = vmatpush2.bf16.msra.mxu0 0
    %149 = vmatprep.subr.bf16.mxu0 0
    %150 = vmatpush2.bf16.msra.mxu0 0
    %151 = vmatprep.subr.bf16.mxu0 0
    %152 = vmatpush2.bf16.msra.mxu0 0
    %153 = vmatprep.subr.bf16.mxu0 0
    %154 = vmatpush2.bf16.msra.mxu0 0
    %155 = vmatprep.subr.bf16.mxu0 0
    %156 = vmatpush2.bf16.msra.mxu0 0
    %157 = vmatprep.subr.bf16.mxu0 0
    %158 = vmatpush2.bf16.msra.mxu0 0
    %159 = vmatprep.mubr.bf16.mxu0 0
    %160 = vmatmul.mubr.bf16.gmra.mxu0 %v125
    %v161 = vpop.f32.mrf.mxu0
    %v162 = vadd.f32 0.0, %v161
    %v163 = vpop.f32.mrf.mxu0
    %v164 = vpop.f32.mrf.mxu0
    %v165 = vpop.f32.mrf.mxu0
    %166 = vdwg.mxu0
    %v169 = vunpack.c.l.s4 1966171168
    %v170 = vunpack.c.0.s8 %v169
    %v171 = vlaneseq
    %v172 = vshrl.u32 %v171, 7
    %v173 = vsub.s32 %v170, %v172
    %v174 = vrot.slane %v162, %v173
    %v175 = vcombine.high %v174, %v174
    %v177 = vunpack.c.l.s4 1966171168
    %v178 = vunpack.c.0.s8 %v177
    %v179 = vlaneseq
    %v180 = vshrl.u32 %v179, 7
    %v181 = vsub.s32 %v178, %v180
    %v182 = vrot.slane %v174, %v181
    %v184 = vunpack.c.l.s4 1966171168
    %v185 = vunpack.c.0.s8 %v184
    %v186 = vlaneseq
    %v187 = vshrl.u32 %v186, 7
    %v188 = vsub.s32 %v185, %v187
    %v189 = vrot.slane %v175, %v188
    %v190 = vlaneseq
    %v191 = vshrl.u32 %v190, 7
    %v192 = vsub.s32 0, %v191
    %v193 = vrot.slane %v182, %v192
    %v194 = vlaneseq
    %v195 = vshrl.u32 %v194, 7
    %v196 = vsub.s32 0, %v195
    %v197 = vrot.slane %v189, %v196
    %v200 = vmul.f32 %v193, %v117
    %v201 = vmul.f32 %v197, %v120
    %v202 = vsel %vm78, %v200, 0.0
    %203 = vadd.xlane.f32.xlu0 %v202
    %v204 = vpop.xlane.xlu0 %203
    %v205 = vsel %vm78, %v201, 0.0
    %206 = vadd.xlane.f32.xlu0 %v205
    %v207 = vpop.xlane.xlu0 %206
    %v210 = vlaneseq
    %v211 = vand.u32 %v210, 127
    %v212 = vlaneseq
    %v213 = vshrl.u32 %v212, 7
    %v214 = vsub.s32 %v211, %v213
    %v215 = vrot.slane %v204, %v214
    %v216 = vlaneseq
    %v217 = vshrl.u32 %v216, 7
    %v218 = vsub.s32 %v211, %v217
    %v219 = vrot.slane %v207, %v218
    %vm220 = vcmask 1041409
    %v221 = vsel %vm220, %v219, %v215
    %vm223 = vcmask 58368
    %v224 = vsel %vm223, %v221, -inf
    %225 = vmax.xlane.f32.xlu0 %v224
    %v226 = vpop.xlane.xlu0 %225
    %v228 = vlaneseq
    %v229 = vshrl.u32 %v228, 7
    %v230 = vsub.s32 0, %v229
    %v231 = vrot.slane %v226, %v230
    %v232 = vlaneseq
    %v233 = vshrl.u32 %v232, 7
    %v234 = vsub.s32 1, %v233
    %v235 = vrot.slane %v226, %v234
    %v238 = vsub.f32 %v204, %v231
    %v239 = vsub.f32 %v207, %v235
    %v240 = vmul.f32 %v238, 1.442695
    %v241 = vpow.pop %v240
    %v242 = vmul.f32 %v239, 1.442695
    %v243 = vpow.pop %v242
    %246 = vset.pattern.permute.xlu0 0
    %247 = vperm.xlu0 %246, %v241
    %v248 = vpop.permute.xlu0 %247
    %249 = vset.pattern.permute.xlu0 0
    %250 = vperm.xlu0 %249, %v243
    %v251 = vpop.permute.xlu0 %250
    %v252 = vlaneseq
    %v253 = vshrl.u32 %v252, 7
    %v254 = vsub.s32 %v211, %v253
    %v255 = vrot.slane %v248, %v254
    %v256 = vlaneseq
    %v257 = vshrl.u32 %v256, 7
    %v258 = vsub.s32 %v211, %v257
    %v259 = vrot.slane %v251, %v258
    %v260 = vsel %vm220, %v259, %v255
    %v262 = vsel %vm223, %v260, 0.0
    %263 = vadd.xlane.f32.xlu0 %v262
    %v264 = vpop.xlane.xlu0 %263
    %v266 = vlaneseq
    %v267 = vshrl.u32 %v266, 7
    %v268 = vsub.s32 0, %v267
    %v269 = vrot.slane %v264, %v268
    %v270 = vlaneseq
    %v271 = vshrl.u32 %v270, 7
    %v272 = vsub.s32 1, %v271
    %v273 = vrot.slane %v264, %v272
    %v276 = vrcp.pop %v269
    %v277 = vmul.f32 %v241, %v276
    %v278 = vrcp.pop %v273
    %v279 = vmul.f32 %v243, %v278
    %281 = vset.pattern.permute.xlu0 0
    %282 = vperm.xlu0 %281, %v277
    %v283 = vpop.permute.xlu0 %282
    %286 = vset.pattern.permute.xlu0 0
    %287 = vperm.xlu0 %286, %v279
    %v288 = vpop.permute.xlu0 %287
    %v290 = vmul.f32 %v283, %v117
    %v291 = vmul.f32 %v288, %v120
    %v292 = vsel %vm78, %v290, 0.0
    %v293 = vrot.slane %v292, 4
    %v294 = vadd.f32 %v292, %v293
    %v295 = vrot.slane %v294, 2
    %v296 = vadd.f32 %v294, %v295
    %v297 = vrot.slane %v296, 1
    %v298 = vadd.f32 %v296, %v297
    %v299 = vsel %vm78, %v291, 0.0
    %v300 = vrot.slane %v299, 4
    %v301 = vadd.f32 %v299, %v300
    %v302 = vrot.slane %v301, 2
    %v303 = vadd.f32 %v301, %v302
    %v304 = vrot.slane %v303, 1
    %v305 = vadd.f32 %v303, %v304
    %v308 = vsel %vm220, %v305, %v298
    %vm310 = vcmask 254976
    %311 = vst.msk [vmem:[#allocation8] sm:$0x3] %vm310, %v308
    // Predicated region
    $region26: #{tpu_custom_call.1} parent=1 // pred_check
      _
    $region27: #{tpu_custom_call.1} parent=1 // pred_check_branch
      %313 = sbr.rel (0) target = $region29
    $region28: #{tpu_custom_call.1} parent=1 // pred_region
      %s315 = ssub.s32 32, 32
      %316 = vsyncadd [#allocation4], %s315
      %s318 = sshll.u32 [#allocation8], 4
      %s319 = int_to_ptr.vmem [resolvable:$true] %s318
      %321 = dma.vmem_to_hbm [thread:$0]  %s319, 32, %s3, [#allocation4]
    $region29: #{tpu_custom_call.1} parent=1 // pred_fallthru
      _
    // Predicated region
    $region30: #{tpu_custom_call.1} parent=1 // pred_check
      _
    $region31: #{tpu_custom_call.1} parent=1 // pred_check_branch
      %323 = sbr.rel (0) target = $region33
    $region32: #{tpu_custom_call.1} parent=1 // pred_region
      %324 = dma.done [#allocation4], 32
    $region33: #{tpu_custom_call.1} parent=1 // pred_fallthru
      _
    %325 = vsyncpa [#allocation3], 1
    %326 = vsyncpa [#allocation6], 1
    %327 = vsyncpa [#allocation4], 1

</llo_original>
